<compile_context>
chip_gen: v6e
topology: v6e:2x2x1
jax: 0.10.0
libtpu: 0.0.40
codegen_flags: <defaults>
</compile_context>

<pallas_src>
import functools

import jax
import jax.numpy as jnp
from jax.experimental import pallas as pl
from jax.experimental.pallas import tpu as pltpu


# ----------------------------------------------------------------------------
# Pallas kernel
# ----------------------------------------------------------------------------
def _yolo_kernel(anchors_ref, pred_ref, out_ref, *, stride, grid_g):
    """One grid step: TN samples of one anchor.

    anchors_ref : SMEM (2*A,)        scaled anchors, flat [w0, h0, w1, h1, ...]
    pred_ref    : VMEM (TN, C5, GG)  raw network outputs (native dtype)
    out_ref     : VMEM (TN, GG, C5)  decoded boxes/conf/cls, channel-last
    """
    a = pl.program_id(1)
    aw = anchors_ref[2 * a]          # scaled anchor w (= a_w / stride)
    ah = anchors_ref[2 * a + 1]      # scaled anchor h

    p = pred_ref[...].astype(jnp.float32)          # (TN, C5, GG)
    tn, c5, gg = p.shape

    # Row (channel) index and flattened spatial index, built in-kernel.
    row = jax.lax.broadcasted_iota(jnp.int32, (c5, gg), 0)
    lane = jax.lax.broadcasted_iota(jnp.int32, (c5, gg), 1).astype(jnp.float32)
    # g = j*G + i  ->  gy = j, gx = i.  Float floor-div with +0.5 margin is
    # exact here (values << 2^23, margin 0.5/G >> f32 rounding error).
    gy = jnp.floor((lane + 0.5) * (1.0 / grid_g))
    gx = lane - gy * grid_g

    grid_off = jnp.where(row == 0, gx, gy)                     # rows 0/1
    wh_scale = jnp.where(row == 2, aw * stride, ah * stride)   # rows 2/3

    sig = jax.nn.sigmoid(p)     # dense EUP work, hidden under the DMA
    ex = jnp.exp(p)

    dec = jnp.where(row < 2, (sig + grid_off) * stride,
          jnp.where(row < 4, ex * wh_scale, sig))              # (TN, C5, GG)

    # (C5, GG) -> (GG, C5) per sample; TN is small and static (unrolled).
    for t in range(tn):
        out_ref[t] = jnp.swapaxes(dec[t], 0, 1)


def _yolo_pallas(pred, anchors_flat, *, stride, grid_g, tn):
    """pred: (N, A, C5, GG) native dtype; anchors_flat: (2*A,) f32."""
    n, a, c5, gg = pred.shape
    kernel = functools.partial(_yolo_kernel, stride=float(stride),
                               grid_g=float(grid_g))
    return pl.pallas_call(
        kernel,
        out_shape=jax.ShapeDtypeStruct((n, a, gg, c5), jnp.float32),
        grid=(n // tn, a),
        in_specs=[
            pl.BlockSpec(memory_space=pltpu.MemorySpace.SMEM),          # anchors
            pl.BlockSpec((tn, pl.Squeezed(), c5, gg),
                         lambda nb, ai: (nb, ai, 0, 0)),                # pred
        ],
        out_specs=pl.BlockSpec((tn, pl.Squeezed(), gg, c5),
                               lambda nb, ai: (nb, ai, 0, 0)),
        compiler_params=pltpu.CompilerParams(
            dimension_semantics=("parallel", "parallel"),
            vmem_limit_bytes=32 * 1024 * 1024),
    )(anchors_flat, pred)


def _pick_tn(n, c5, gg, budget_bytes=2 * 1024 * 1024, cap=8):
    """Largest divisor of n (<= cap) whose input block fits the byte budget.

    Budget kept modest so the double-buffered in+out working set stays well
    under every generation's scoped VMEM (v5e 16 MiB / v6e 32 MiB / v7x 32 MiB
    default; 64 MiB physical per core on v7x)."""
    best = 1
    for cand in range(1, min(n, cap) + 1):
        if n % cand == 0 and cand * c5 * gg * 4 <= budget_bytes:
            best = cand
    return best


# ----------------------------------------------------------------------------
# Module wrapper (mirrors the PyTorch YOLOLayer, inference path)
# ----------------------------------------------------------------------------
class YOLOLayerPallas:
    def __init__(self, anchors, num_classes, img_dim=416):
        self.anchors = anchors
        self.num_anchors = len(anchors)
        self.num_classes = num_classes
        self.img_dim = img_dim
        self.grid_size = 1
        self.compute_grid_offsets(self.grid_size)

    def compute_grid_offsets(self, grid_size):
        self.grid_size = grid_size
        self.img_stride = self.img_dim / self.grid_size
        self.scaled_anchors = jnp.asarray(
            [(a_w / self.img_stride, a_h / self.img_stride)
             for a_w, a_h in self.anchors], dtype=jnp.float32)  # (A, 2)
        self.anchors_flat = self.scaled_anchors.reshape(-1)      # (2A,)

    def __call__(self, x, targets=None, img_dim=None):
        # TODO(synk): training branch (build_targets + MSE/BCE losses) is not
        # implemented — build_targets is not defined in the reference module.
        if img_dim is not None:
            self.img_dim = img_dim
        num_samples = x.shape[0]
        grid_size = x.shape[2]
        A = self.num_anchors
        C5 = self.num_classes + 5
        if grid_size != self.grid_size:
            self.compute_grid_offsets(grid_size)
        G = grid_size
        GG = G * G

        # Layout glue (metadata only, native dtype kept): (N, A*C5, G, G) -> (N, A, C5, GG)
        pred = x.reshape(num_samples, A, C5, GG)
        tn = _pick_tn(num_samples, C5, GG)

        out = _yolo_pallas(pred, self.anchors_flat,
                           stride=self.img_stride, grid_g=G, tn=tn)
        # (N, A, GG, C5) is already contiguous in the final order:
        output = out.reshape(num_samples, A * GG, C5)   # free reshape

        if targets is None:
            return output, 0
        raise NotImplementedError("training path not implemented")


# ----------------------------------------------------------------------------
# Pure-JAX reference (mirrors the PyTorch forward, targets=None)
# ----------------------------------------------------------------------------
def yolo_reference(x, anchors, num_classes, img_dim):
    N = x.shape[0]
    A = len(anchors)
    C = num_classes
    G = x.shape[2]
    stride = img_dim / G
    pred = x.astype(jnp.float32).reshape(N, A, C + 5, G, G).transpose(0, 1, 3, 4, 2)
    sx = jax.nn.sigmoid(pred[..., 0])
    sy = jax.nn.sigmoid(pred[..., 1])
    w = pred[..., 2]
    h = pred[..., 3]
    conf = jax.nn.sigmoid(pred[..., 4])
    cls = jax.nn.sigmoid(pred[..., 5:])
    grid_x = jnp.tile(jnp.arange(G, dtype=jnp.float32), (G, 1)).reshape(1, 1, G, G)
    grid_y = grid_x.transpose(0, 1, 3, 2)
    scaled = jnp.asarray([(aw / stride, ah / stride) for aw, ah in anchors],
                         dtype=jnp.float32)
    anchor_w = scaled[:, 0].reshape(1, A, 1, 1)
    anchor_h = scaled[:, 1].reshape(1, A, 1, 1)
    boxes = jnp.stack([sx + grid_x, sy + grid_y,
                       jnp.exp(w) * anchor_w, jnp.exp(h) * anchor_h], axis=-1)
    output = jnp.concatenate(
        [boxes.reshape(N, -1, 4) * stride,
         conf.reshape(N, -1, 1),
         cls.reshape(N, -1, C)], axis=-1)
    return output


# ----------------------------------------------------------------------------
if __name__ == "__main__":
    key = jax.random.PRNGKey(0)

    anchors = [(10, 13), (16, 30), (33, 23)]     # 3 anchors
    num_classes = 3                              # C+5 = 8 channels per anchor
    img_dim = 416
    N, G = 2, 16
    channels = len(anchors) * (num_classes + 5)  # 24

    x = jax.random.normal(key, (N, channels, G, G), dtype=jnp.float32) * 0.5

    layer = YOLOLayerPallas(anchors, num_classes, img_dim=img_dim)
    output, loss = layer(x, targets=None, img_dim=img_dim)
    output = jax.block_until_ready(output)

    ref = jax.block_until_ready(yolo_reference(x, anchors, num_classes, img_dim))

    assert output.shape == (N, len(anchors) * G * G, num_classes + 5), output.shape
    assert loss == 0
    max_err = float(jnp.max(jnp.abs(output - ref)))
    assert jnp.allclose(output, ref, atol=1e-4, rtol=1e-4), max_err

    print("KERNEL_OK")
</pallas_src>

<mosaic_0001>
module attributes {stable_mosaic.version = 11 : i64} {
  func.func @_yolo_kernel(%arg0: i32, %arg1: i32, %arg2: memref<6xf32, #tpu.memory_space<smem>>, %arg3: memref<2x1x8x256xf32, #tpu.memory_space<vmem>>, %arg4: memref<2x1x256x8xf32, #tpu.memory_space<vmem>>) attributes {dimension_semantics = [#tpu.dimension_semantics<parallel>, #tpu.dimension_semantics<parallel>], iteration_bounds = array<i64: 1, 3>, scalar_prefetch = 0 : i64, scratch_operands = 0 : i64, tpu.core_type = #tpu.core_type<tc>, window_params = [{transform_indices = @transform_0, window_bounds = array<i64: 6>}, {transform_indices = @transform_1, window_bounds = array<i64: 2, 1, 8, 256>}, {transform_indices = @transform_2, window_bounds = array<i64: 2, 1, 256, 8>}]} {
    %c2_i32 = arith.constant 2 : i32
    %0 = arith.muli %c2_i32, %arg1 : i32
    %1 = arith.index_cast %0 : i32 to index
    %2 = memref.load %arg2[%1] : memref<6xf32, #tpu.memory_space<smem>>
    %c2_i32_0 = arith.constant 2 : i32
    %3 = arith.muli %c2_i32_0, %arg1 : i32
    %c1_i32 = arith.constant 1 : i32
    %4 = arith.addi %3, %c1_i32 : i32
    %5 = arith.index_cast %4 : i32 to index
    %6 = memref.load %arg2[%5] : memref<6xf32, #tpu.memory_space<smem>>
    %c0 = arith.constant 0 : index
    %c0_1 = arith.constant 0 : index
    %c0_2 = arith.constant 0 : index
    %c0_3 = arith.constant 0 : index
    %7 = vector.load %arg3[%c0, %c0_1, %c0_2, %c0_3] : memref<2x1x8x256xf32, #tpu.memory_space<vmem>>, vector<2x1x8x256xf32>
    %8 = vector.shape_cast %7 : vector<2x1x8x256xf32> to vector<2x8x256xf32>
    %9 = tpu.iota {dimensions = array<i32: 0>} : vector<8x256xi32>
    %10 = tpu.iota {dimensions = array<i32: 1>} : vector<8x256xi32>
    %11 = arith.sitofp %10 : vector<8x256xi32> to vector<8x256xf32>
    %cst = arith.constant 5.000000e-01 : f32
    %12 = vector.broadcast %cst : f32 to vector<8x256xf32>
    %13 = arith.addf %11, %12 : vector<8x256xf32>
    %cst_4 = arith.constant 6.250000e-02 : f32
    %14 = vector.broadcast %cst_4 : f32 to vector<8x256xf32>
    %15 = arith.mulf %13, %14 : vector<8x256xf32>
    %16 = math.floor %15 : vector<8x256xf32>
    %cst_5 = arith.constant 1.600000e+01 : f32
    %17 = vector.broadcast %cst_5 : f32 to vector<8x256xf32>
    %18 = arith.mulf %16, %17 : vector<8x256xf32>
    %19 = arith.subf %11, %18 : vector<8x256xf32>
    %c0_i32 = arith.constant 0 : i32
    %20 = vector.broadcast %c0_i32 : i32 to vector<8x256xi32>
    %21 = arith.cmpi eq, %9, %20 : vector<8x256xi32>
    %22 = arith.select %21, %19, %16 : vector<8x256xi1>, vector<8x256xf32>
    %c2_i32_6 = arith.constant 2 : i32
    %23 = vector.broadcast %c2_i32_6 : i32 to vector<8x256xi32>
    %24 = arith.cmpi eq, %9, %23 : vector<8x256xi32>
    %cst_7 = arith.constant 2.600000e+01 : f32
    %25 = arith.mulf %2, %cst_7 : f32
    %cst_8 = arith.constant 2.600000e+01 : f32
    %26 = arith.mulf %6, %cst_8 : f32
    %27 = vector.broadcast %25 : f32 to vector<8x256xf32>
    %28 = vector.broadcast %26 : f32 to vector<8x256xf32>
    %29 = arith.select %24, %27, %28 : vector<8x256xi1>, vector<8x256xf32>
    %30 = arith.negf %8 : vector<2x8x256xf32>
    %31 = math.exp %30 : vector<2x8x256xf32>
    %cst_9 = arith.constant 1.000000e+00 : f32
    %32 = vector.broadcast %cst_9 : f32 to vector<2x8x256xf32>
    %33 = arith.addf %32, %31 : vector<2x8x256xf32>
    %34 = arith.divf %32, %33 : vector<2x8x256xf32>
    %35 = math.exp %8 : vector<2x8x256xf32>
    %c2_i32_10 = arith.constant 2 : i32
    %36 = vector.broadcast %c2_i32_10 : i32 to vector<8x256xi32>
    %37 = arith.cmpi slt, %9, %36 : vector<8x256xi32>
    %38 = vector.shape_cast %22 : vector<8x256xf32> to vector<1x8x256xf32>
    %39 = vector.broadcast %38 : vector<1x8x256xf32> to vector<2x8x256xf32>
    %40 = arith.addf %34, %39 : vector<2x8x256xf32>
    %cst_11 = arith.constant 2.600000e+01 : f32
    %41 = vector.broadcast %cst_11 : f32 to vector<2x8x256xf32>
    %42 = arith.mulf %40, %41 : vector<2x8x256xf32>
    %c4_i32 = arith.constant 4 : i32
    %43 = vector.broadcast %c4_i32 : i32 to vector<8x256xi32>
    %44 = arith.cmpi slt, %9, %43 : vector<8x256xi32>
    %45 = vector.shape_cast %29 : vector<8x256xf32> to vector<1x8x256xf32>
    %46 = vector.broadcast %45 : vector<1x8x256xf32> to vector<2x8x256xf32>
    %47 = arith.mulf %35, %46 : vector<2x8x256xf32>
    %48 = vector.shape_cast %44 : vector<8x256xi1> to vector<1x8x256xi1>
    %49 = vector.broadcast %48 : vector<1x8x256xi1> to vector<2x8x256xi1>
    %50 = arith.select %49, %47, %34 : vector<2x8x256xi1>, vector<2x8x256xf32>
    %51 = vector.shape_cast %37 : vector<8x256xi1> to vector<1x8x256xi1>
    %52 = vector.broadcast %51 : vector<1x8x256xi1> to vector<2x8x256xi1>
    %53 = arith.select %52, %42, %50 : vector<2x8x256xi1>, vector<2x8x256xf32>
    %54 = vector.extract_strided_slice %53 {offsets = [0, 0, 0], sizes = [1, 8, 256], strides = [1, 1, 1]} : vector<2x8x256xf32> to vector<1x8x256xf32>
    %55 = vector.shape_cast %54 : vector<1x8x256xf32> to vector<8x256xf32>
    %56 = tpu.transpose %55, [1, 0] : vector<8x256xf32> -> vector<256x8xf32>
    %c0_12 = arith.constant 0 : index
    %c0_13 = arith.constant 0 : index
    %c0_14 = arith.constant 0 : index
    %c0_15 = arith.constant 0 : index
    %57 = vector.load %arg4[%c0_12, %c0_13, %c0_14, %c0_15] : memref<2x1x256x8xf32, #tpu.memory_space<vmem>>, vector<1x1x256x8xf32>
    %58 = vector.shape_cast %57 : vector<1x1x256x8xf32> to vector<256x8xf32>
    %59 = vector.shape_cast %56 : vector<256x8xf32> to vector<1x1x256x8xf32>
    tpu.vector_store %arg4[%c0_12, %c0_13, %c0_14, %c0_15], %59 {strides = array<i32>} : memref<2x1x256x8xf32, #tpu.memory_space<vmem>>, vector<1x1x256x8xf32>,
    %60 = vector.extract_strided_slice %53 {offsets = [1, 0, 0], sizes = [1, 8, 256], strides = [1, 1, 1]} : vector<2x8x256xf32> to vector<1x8x256xf32>
    %61 = vector.shape_cast %60 : vector<1x8x256xf32> to vector<8x256xf32>
    %62 = tpu.transpose %61, [1, 0] : vector<8x256xf32> -> vector<256x8xf32>
    %c1 = arith.constant 1 : index
    %c0_16 = arith.constant 0 : index
    %c0_17 = arith.constant 0 : index
    %c0_18 = arith.constant 0 : index
    %63 = vector.load %arg4[%c1, %c0_16, %c0_17, %c0_18] : memref<2x1x256x8xf32, #tpu.memory_space<vmem>>, vector<1x1x256x8xf32>
    %64 = vector.shape_cast %63 : vector<1x1x256x8xf32> to vector<256x8xf32>
    %65 = vector.shape_cast %62 : vector<256x8xf32> to vector<1x1x256x8xf32>
    tpu.vector_store %arg4[%c1, %c0_16, %c0_17, %c0_18], %65 {strides = array<i32>} : memref<2x1x256x8xf32, #tpu.memory_space<vmem>>, vector<1x1x256x8xf32>,
    return
  }
  func.func @transform_0(%arg0: i32, %arg1: i32) -> i32 {
    %c0_i32 = arith.constant 0 : i32
    %c0_i32_0 = arith.constant 0 : i32
    return %c0_i32 : i32
  }
  func.func @transform_1(%arg0: i32, %arg1: i32) -> (i32, i32, i32, i32) {
    %c0_i32 = arith.constant 0 : i32
    %c0_i32_0 = arith.constant 0 : i32
    %c0_i32_1 = arith.constant 0 : i32
    return %arg0, %arg1, %c0_i32, %c0_i32_0 : i32, i32, i32, i32
  }
  func.func @transform_2(%arg0: i32, %arg1: i32) -> (i32, i32, i32, i32) {
    %c0_i32 = arith.constant 0 : i32
    %c0_i32_0 = arith.constant 0 : i32
    %c0_i32_1 = arith.constant 0 : i32
    return %arg0, %arg1, %c0_i32, %c0_i32_0 : i32, i32, i32, i32
  }
}

</mosaic_0001>

<llo_original>
// kernel: tpu_custom_call.1
$region0: #{tpu_custom_call.1}
  #allocation0 [shape = 'u32[]', space=smem, size = 0x4, offset = 0x4, fixed_abs, tag = 'smem constant byte address 0x4 - core index']
  #allocation1 [shape = 'u32[144,128]{1,0:T(1,128)}', space=vmem, size = 0x12000, scoped, tag = 'internal scratch']
  %s0 = inlined_call_operand.hbm [shape: f32[6], index: 0, kind: input, shape index: {}]
  %s1 = inlined_call_operand.hbm [shape: f32[2,3,8,256], index: 1, kind: input, shape index: {}]
  %s2 = inlined_call_operand.vmem [shape: f32[2,3,256,8], index: 2, kind: output, shape index: {}]
  %s3 = sld [smem:[#allocation0]]
  $region83: #{tpu_custom_call.1} parent=0
    _
  %s5 = ssub.s32 1, %s3
  %s6 = scalar_select 0, %s5, %s3
  $region1: #{tpu_custom_call.1} parent=0
    #allocation2 [shape = 'u8[512]{0}', space=smem, size = 0x200, scoped, tag = 'input window, operand 0, single buffered']
    #allocation3 [shape = 's32[2]{0}', space=sflag, size = 0x8, scoped, tag = 'scoped memory for tpu_custom_call.1']
    #allocation4 [shape = 's32[2]{0}', space=sflag, size = 0x8, scoped, tag = 'scoped memory for tpu_custom_call.1']
    #allocation5 [shape = 'u8[32768]{0}', space=vmem, size = 0x8000, scoped, tag = 'input window, operand 1']
    #allocation6 [shape = 'u8[524288]{0}', space=vmem, size = 0x80000, scoped, tag = 'output window, operand 0']
    %7 = vsyncpa [#allocation4], 0
    %8 = vsyncpa [#allocation3], 0
    %s9 = scalar_lea.sflag [#allocation3], 1
    %10 = vsyncpa %s9, 0
    loop: start=0, step=1, limit=5
    $region2: #{tpu_custom_call.1} parent=1 // loop_pre_header
      _
    $region3: #{tpu_custom_call.1} parent=1 // loop_header
      %s12 = sphi 0, %s16
      %p13 = scmp.ge.s32.totalorder %s12, 5
      %s19 = sphi 0, %s31
      %s20 = sphi 0, %s27
      %s21 = sphi 0, %s19
      %s22 = sphi 0, %s20
      %s23 = sphi 0, %s21
      %s24 = sphi 0, %s22
      %s32 = sphi 0, %s32
      %s34 = sphi 0, %s32
      %s35 = sphi 0, %s34
      %s49 = sphi 0, %s35
      %s57 = sphi 0, %s59
      %s60 = sphi 0, %s57
      %s61 = sphi 0, %s60
      %s77 = sphi 0, %s61
      %s85 = sphi 0, %s87
      %s88 = sphi 0, %s85
      %s89 = sphi 0, %s88
      %s105 = sphi 0, %s89
    $region4: #{tpu_custom_call.1} parent=1 // loop_header_branch
      %15 = sbr.rel (%p13) target = $region8
    $region5: #{tpu_custom_call.1} parent=1 // loop_body
      %s17 = ssub.s32 %s12, 1
      %s18 = ssub.s32 %s12, 2
      %s25 = sadd.s32 1, %s20
      %p26 = scmp.ge.s32.totalorder %s25, 3
      %s27 = scalar_select %p26, 0, %s25
      %s28 = sadd.s32 1, %s19
      %s29 = scalar_select %p26, %s28, %s19
      %p30 = scmp.ge.s32.totalorder %s29, 1
      %s31 = scalar_select %p30, 0, %s29
      %s33 = sadd.s32 %s32, 1
      %p36 = scmp.eq.s32.totalorder %s12, 2
      %p37 = scmp.ne.s32.totalorder %s32, %s34
      %p38 = scmp.eq.s32.totalorder %s12, 0
      %p39 = por %p37, %p38
      %p40 = scmp.ne.s32.totalorder %s32, %s34
      %p41 = scmp.eq.s32.totalorder %s17, 2
      %p42 = por %p40, %p41
      %p43 = scmp.ne.s32.totalorder %s34, %s35
      %p44 = scmp.eq.s32.totalorder %s17, 0
      %p45 = por %p43, %p44
      %p46 = scmp.ne.s32.totalorder %s34, %s35
      %p47 = scmp.eq.s32.totalorder %s18, 2
      %p48 = por %p46, %p47
      %p50 = scmp.ne.s32.totalorder %s35, %s49
      %p51 = scmp.eq.s32.totalorder %s18, 0
      %p52 = por %p50, %p51
      %s53 = ssub.s32 %s19, %s31
      %s54 = ssub.s32 %s20, %s27
      %s55 = sor.u32 %s53, %s54
      %p56 = scmp.eq.s32.totalorder %s55, 0
      %s58 = sadd.s32 %s57, 1
      %s59 = scalar_select %p56, %s57, %s58
      %p62 = pneg %p56
      %p63 = scmp.eq.s32.totalorder %s12, 2
      %p64 = por %p62, %p63
      %p65 = scmp.ne.s32.totalorder %s57, %s60
      %p66 = scmp.eq.s32.totalorder %s12, 0
      %p67 = por %p65, %p66
      %p68 = scmp.ne.s32.totalorder %s57, %s60
      %p69 = scmp.eq.s32.totalorder %s17, 2
      %p70 = por %p68, %p69
      %p71 = scmp.ne.s32.totalorder %s60, %s61
      %p72 = scmp.eq.s32.totalorder %s17, 0
      %p73 = por %p71, %p72
      %p74 = scmp.ne.s32.totalorder %s60, %s61
      %p75 = scmp.eq.s32.totalorder %s18, 2
      %p76 = por %p74, %p75
      %p78 = scmp.ne.s32.totalorder %s61, %s77
      %p79 = scmp.eq.s32.totalorder %s18, 0
      %p80 = por %p78, %p79
      %s81 = ssub.s32 %s19, %s31
      %s82 = ssub.s32 %s20, %s27
      %s83 = sor.u32 %s81, %s82
      %p84 = scmp.eq.s32.totalorder %s83, 0
      %s86 = sadd.s32 %s85, 1
      %s87 = scalar_select %p84, %s85, %s86
      %p90 = pneg %p84
      %p91 = scmp.eq.s32.totalorder %s12, 2
      %p92 = por %p90, %p91
      %p93 = scmp.ne.s32.totalorder %s85, %s88
      %p94 = scmp.eq.s32.totalorder %s12, 0
      %p95 = por %p93, %p94
      %p96 = scmp.ne.s32.totalorder %s85, %s88
      %p97 = scmp.eq.s32.totalorder %s17, 2
      %p98 = por %p96, %p97
      %p99 = scmp.ne.s32.totalorder %s88, %s89
      %p100 = scmp.eq.s32.totalorder %s17, 0
      %p101 = por %p99, %p100
      %p102 = scmp.ne.s32.totalorder %s88, %s89
      %p103 = scmp.eq.s32.totalorder %s18, 2
      %p104 = por %p102, %p103
      %p106 = scmp.ne.s32.totalorder %s89, %s105
      %p107 = scmp.eq.s32.totalorder %s18, 0
      %p108 = por %p106, %p107
      %p109 = scmp.le.s32.totalorder 1, %s12
      %p110 = scmp.lt.s32.totalorder %s12, 4
      %p111 = pnand %p109, %p110
      %p112 = pneg %p111
      // Predicated region
      $region9: #{tpu_custom_call.1} parent=5 // pred_check
        _
      $region10: #{tpu_custom_call.1} parent=5 // pred_check_branch
        %114 = sbr.rel (%p111) target = $region12
      $region11: #{tpu_custom_call.1} parent=5 // pred_region
        %s115 = ssub.s32 %s12, 1
        // Predicated region
        $region13: #{tpu_custom_call.1} parent=11 // pred_check
          %p116 = pneg %p45
        $region14: #{tpu_custom_call.1} parent=11 // pred_check_branch
          %118 = sbr.rel (%p116) target = $region16
        $region15: #{tpu_custom_call.1} parent=11 // pred_region
          %s120 = ssub.s32 16, 16
          %121 = vsyncadd [#allocation4], %s120
          %124 = dma.hbm_to_smem %s0, 16, [#allocation2], [#allocation4]
        $region16: #{tpu_custom_call.1} parent=11 // pred_fallthru
          _
      $region12: #{tpu_custom_call.1} parent=5 // pred_fallthru
        _
      %p125 = scmp.lt.s32.totalorder %s12, 3
      // Predicated region
      $region17: #{tpu_custom_call.1} parent=5 // pred_check
        %p126 = pneg %p125
      $region18: #{tpu_custom_call.1} parent=5 // pred_check_branch
        %128 = sbr.rel (%p126) target = $region20
      $region19: #{tpu_custom_call.1} parent=5 // pred_region
        // Predicated region
        $region21: #{tpu_custom_call.1} parent=19 // pred_check
          %p129 = pneg %p67
        $region22: #{tpu_custom_call.1} parent=19 // pred_check_branch
          %131 = sbr.rel (%p129) target = $region24
        $region23: #{tpu_custom_call.1} parent=19 // pred_region
          %s132 = sand.u32 %s57, 1
          %s133 = scalar_lea.sflag [#allocation3], %s132
          %s134 = sand.u32 %s57, 1
          %s135 = smul.addr %s134, 32
          %s136 = scalar_lea.vmem [#allocation5], %s135
          %s137 = smul.u32 2, %s19
          %s139 = ssub.s32 512, 512
          %140 = vsyncadd %s133, %s139
          %s141 = smul.addr %s20, 2
          %s142 = smul.addr %s137, 6
          %s143 = sadd.s32 %s141, %s142
          %s144 = smul.addr %s143, 128
          %s145 = scalar_lea.hbm %s1, %s144
          %s146 = sshll.u32 %s136, 4
          %s147 = int_to_ptr.vmem [resolvable:$true] %s146
          %152 = dma.hbm_to_vmem [thread:$0]  %s145, 512, %s147, %s133, 768, 256, 16
        $region24: #{tpu_custom_call.1} parent=19 // pred_fallthru
          _
      $region20: #{tpu_custom_call.1} parent=5 // pred_fallthru
        _
      %p153 = scmp.le.s32.totalorder 1, %s12
      %p154 = scmp.lt.s32.totalorder %s12, 4
      %p155 = pnand %p153, %p154
      %p156 = pneg %p155
      // Predicated region
      $region25: #{tpu_custom_call.1} parent=5 // pred_check
        _
      $region26: #{tpu_custom_call.1} parent=5 // pred_check_branch
        %158 = sbr.rel (%p155) target = $region28
      $region27: #{tpu_custom_call.1} parent=5 // pred_region
        %s159 = ssub.s32 %s12, 1
        // Predicated region
        $region29: #{tpu_custom_call.1} parent=27 // pred_check
          %p160 = pneg %p45
        $region30: #{tpu_custom_call.1} parent=27 // pred_check_branch
          %162 = sbr.rel (%p160) target = $region32
        $region31: #{tpu_custom_call.1} parent=27 // pred_region
          %163 = dma.done [#allocation4], 16
        $region32: #{tpu_custom_call.1} parent=27 // pred_fallthru
          _
        %s164 = sand.u32 %s60, 1
        %s165 = scalar_lea.sflag [#allocation3], %s164
        %s166 = sand.u32 %s60, 1
        %s167 = smul.addr %s166, 32
        %s168 = scalar_lea.vmem [#allocation5], %s167
        // Predicated region
        $region33: #{tpu_custom_call.1} parent=27 // pred_check
          %p169 = pneg %p73
        $region34: #{tpu_custom_call.1} parent=27 // pred_check_branch
          %171 = sbr.rel (%p169) target = $region36
        $region35: #{tpu_custom_call.1} parent=27 // pred_region
          %172 = dma.done %s165, 512
        $region36: #{tpu_custom_call.1} parent=27 // pred_fallthru
          _
        %173 = sfence
        %p174 = pneg %p45
        %p175 = pneg %p42
        %s176 = sand.u32 %s60, 1
        %s177 = scalar_lea.sflag [#allocation3], %s176
        %s178 = sand.u32 %s60, 1
        %s179 = smul.addr %s178, 32
        %s180 = scalar_lea.vmem [#allocation5], %s179
        %p181 = pneg %p73
        %p182 = pneg %p70
        %p183 = pneg %p101
        %p184 = pneg %p98
        %s185 = sand.u32 %s88, 1
        %s186 = sand.u32 %s88, 1
        %s187 = smul.addr %s186, 512
        %s188 = scalar_lea.vmem [#allocation6], %s187
        %s189 = smul.u32 2, %s21
        %s190 = smul.u32 2, %s21
        %s191 = smul.u32 %s22, 2
        %s192 = sld [smem:[#allocation2 + %s191]]
        %s193 = sadd.s32 %s191, 1
        %s194 = sld [smem:[#allocation2 + %s193]]
        %v195 = vld [vmem:[%s168] sm:$0xff]
        %v196 = vld [vmem:[%s168 + $0x8] sm:$0xff]
        %v197 = vld [vmem:[%s168 + $0x10] sm:$0xff]
        %v198 = vld [vmem:[%s168 + $0x18] sm:$0xff]
        %v199 = vlaneseq
        %v200 = vshrl.u32 %v199, 7
        %v201 = vlaneseq
        %v202 = vand.u32 %v201, 127
        %v203 = vadd.s32 %v202, 128
        %v204 = vcvt.s32.f32 %v202
        %v205 = vcvt.s32.f32 %v203
        %v206 = vadd.f32 %v204, 0.5
        %v207 = vadd.f32 %v205, 0.5
        %v208 = vmul.f32 %v206, 0.0625
        %v209 = vmul.f32 %v207, 0.0625
        %v210 = vfloor.f32 %v208
        %v211 = vfloor.f32 %v209
        %v212 = vmul.f32 %v210, 16.0
        %v213 = vmul.f32 %v211, 16.0
        %v214 = vsub.f32 %v204, %v212
        %v215 = vsub.f32 %v205, %v213
        %vm216 = vcmp.eq.s32.totalorder %v200, 0
        %v217 = vsel %vm216, %v214, %v210
        %v218 = vsel %vm216, %v215, %v211
        %vm219 = vcmp.eq.s32.totalorder %v200, 2
        %s220 = smul.f32 %s192, 26.0
        %s221 = smul.f32 %s194, 26.0
        %v222 = vstv %s220
        %v223 = vstv %s221
        %v224 = vsel %vm219, %v222, %v223
        %v225 = vxor.u32 %v195, 2147483648
        %v226 = vxor.u32 %v196, 2147483648
        %v227 = vxor.u32 %v197, 2147483648
        %v228 = vxor.u32 %v198, 2147483648
        %v229 = vmul.f32 %v225, 1.442695
        %v230 = vpow.pop %v229
        %v231 = vmul.f32 %v226, 1.442695
        %v232 = vpow.pop %v231
        %v233 = vmul.f32 %v227, 1.442695
        %v234 = vpow.pop %v233
        %v235 = vmul.f32 %v228, 1.442695
        %v236 = vpow.pop %v235
        %v237 = vadd.f32 %v230, 1.0
        %v238 = vadd.f32 %v232, 1.0
        %v239 = vadd.f32 %v234, 1.0
        %v240 = vadd.f32 %v236, 1.0
        %v241 = vrcp.pop %v237
        %v242 = vmul.f32 1.0, %v241
        %v243 = vrcp.pop %v238
        %v244 = vmul.f32 1.0, %v243
        %v245 = vrcp.pop %v239
        %v246 = vmul.f32 1.0, %v245
        %v247 = vrcp.pop %v240
        %v248 = vmul.f32 1.0, %v247
        %v249 = vmul.f32 %v195, 1.442695
        %v250 = vpow.pop %v249
        %v251 = vmul.f32 %v196, 1.442695
        %v252 = vpow.pop %v251
        %v253 = vmul.f32 %v197, 1.442695
        %v254 = vpow.pop %v253
        %v255 = vmul.f32 %v198, 1.442695
        %v256 = vpow.pop %v255
        %vm257 = vcmp.lt.s32.totalorder %v200, 2
        %v258 = vadd.f32 %v242, %v217
        %v259 = vadd.f32 %v244, %v218
        %v260 = vadd.f32 %v246, %v217
        %v261 = vadd.f32 %v248, %v218
        %v262 = vmul.f32 %v258, 26.0
        %v263 = vmul.f32 %v259, 26.0
        %v264 = vmul.f32 %v260, 26.0
        %v265 = vmul.f32 %v261, 26.0
        %vm266 = vcmp.lt.s32.totalorder %v200, 4
        %v267 = vmul.f32 %v250, %v224
        %v268 = vmul.f32 %v252, %v224
        %v269 = vmul.f32 %v254, %v224
        %v270 = vmul.f32 %v256, %v224
        %v271 = vsel %vm266, 1, 0
        %vm272 = vcmp.eq.s32.totalorder %v271, 1
        %v273 = vsel %vm272, %v267, %v242
        %v274 = vsel %vm272, %v268, %v244
        %v275 = vsel %vm272, %v269, %v246
        %v276 = vsel %vm272, %v270, %v248
        %v277 = vsel %vm257, 1, 0
        %vm278 = vcmp.eq.s32.totalorder %v277, 1
        %v279 = vsel %vm278, %v262, %v273
        %v280 = vsel %vm278, %v263, %v274
        %v281 = vsel %vm278, %v264, %v275
        %v282 = vsel %vm278, %v265, %v276
        %283 = vxpose.xlu0.b32.start [1/16] %v279, 128
        %284 = vxpose.xlu0.b32.cont [2/16] 0.0, 128
        %285 = vxpose.xlu0.b32.cont [3/16] 0.0, 128
        %286 = vxpose.xlu0.b32.cont [4/16] 0.0, 128
        %287 = vxpose.xlu0.b32.cont [5/16] 0.0, 128
        %288 = vxpose.xlu0.b32.cont [6/16] 0.0, 128
        %289 = vxpose.xlu0.b32.cont [7/16] 0.0, 128
        %290 = vxpose.xlu0.b32.cont [8/16] 0.0, 128
        %291 = vxpose.xlu0.b32.cont [9/16] 0.0, 128
        %292 = vxpose.xlu0.b32.cont [10/16] 0.0, 128
        %293 = vxpose.xlu0.b32.cont [11/16] 0.0, 128
        %294 = vxpose.xlu0.b32.cont [12/16] 0.0, 128
        %295 = vxpose.xlu0.b32.cont [13/16] 0.0, 128
        %296 = vxpose.xlu0.b32.cont [14/16] 0.0, 128
        %297 = vxpose.xlu0.b32.cont [15/16] 0.0, 128
        %298 = vxpose.xlu0.b32.end [16/16] 0.0, 128
        %v299 = vpop.trf.xlu0
        %v300 = vpop.trf.xlu0
        %v301 = vpop.trf.xlu0
        %v302 = vpop.trf.xlu0
        %v303 = vpop.trf.xlu0
        %v304 = vpop.trf.xlu0
        %v305 = vpop.trf.xlu0
        %v306 = vpop.trf.xlu0
        %v307 = vpop.trf.xlu0
        %v308 = vpop.trf.xlu0
        %v309 = vpop.trf.xlu0
        %v310 = vpop.trf.xlu0
        %v311 = vpop.trf.xlu0
        %v312 = vpop.trf.xlu0
        %v313 = vpop.trf.xlu0
        %v314 = vpop.trf.xlu0
        %315 = vxpose.xlu0.b32.start [1/16] %v280, 128
        %316 = vxpose.xlu0.b32.cont [2/16] 0.0, 128
        %317 = vxpose.xlu0.b32.cont [3/16] 0.0, 128
        %318 = vxpose.xlu0.b32.cont [4/16] 0.0, 128
        %319 = vxpose.xlu0.b32.cont [5/16] 0.0, 128
        %320 = vxpose.xlu0.b32.cont [6/16] 0.0, 128
        %321 = vxpose.xlu0.b32.cont [7/16] 0.0, 128
        %322 = vxpose.xlu0.b32.cont [8/16] 0.0, 128
        %323 = vxpose.xlu0.b32.cont [9/16] 0.0, 128
        %324 = vxpose.xlu0.b32.cont [10/16] 0.0, 128
        %325 = vxpose.xlu0.b32.cont [11/16] 0.0, 128
        %326 = vxpose.xlu0.b32.cont [12/16] 0.0, 128
        %327 = vxpose.xlu0.b32.cont [13/16] 0.0, 128
        %328 = vxpose.xlu0.b32.cont [14/16] 0.0, 128
        %329 = vxpose.xlu0.b32.cont [15/16] 0.0, 128
        %330 = vxpose.xlu0.b32.end [16/16] 0.0, 128
        %v331 = vpop.trf.xlu0
        %v332 = vpop.trf.xlu0
        %v333 = vpop.trf.xlu0
        %v334 = vpop.trf.xlu0
        %v335 = vpop.trf.xlu0
        %v336 = vpop.trf.xlu0
        %v337 = vpop.trf.xlu0
        %v338 = vpop.trf.xlu0
        %v339 = vpop.trf.xlu0
        %v340 = vpop.trf.xlu0
        %v341 = vpop.trf.xlu0
        %v342 = vpop.trf.xlu0
        %v343 = vpop.trf.xlu0
        %v344 = vpop.trf.xlu0
        %v345 = vpop.trf.xlu0
        %v346 = vpop.trf.xlu0
        %vm347 = vcmask 64512
        %348 = vst.msk [vmem:[%s188] sm:$0xff] %vm347, %v299
        %349 = vst.msk [vmem:[%s188 + $0x8] sm:$0xff] %vm347, %v300
        %350 = vst.msk [vmem:[%s188 + $0x10] sm:$0xff] %vm347, %v301
        %351 = vst.msk [vmem:[%s188 + $0x18] sm:$0xff] %vm347, %v302
        %352 = vst.msk [vmem:[%s188 + $0x20] sm:$0xff] %vm347, %v303
        %353 = vst.msk [vmem:[%s188 + $0x28] sm:$0xff] %vm347, %v304
        %354 = vst.msk [vmem:[%s188 + $0x30] sm:$0xff] %vm347, %v305
        %355 = vst.msk [vmem:[%s188 + $0x38] sm:$0xff] %vm347, %v306
        %356 = vst.msk [vmem:[%s188 + $0x40] sm:$0xff] %vm347, %v307
        %357 = vst.msk [vmem:[%s188 + $0x48] sm:$0xff] %vm347, %v308
        %358 = vst.msk [vmem:[%s188 + $0x50] sm:$0xff] %vm347, %v309
        %359 = vst.msk [vmem:[%s188 + $0x58] sm:$0xff] %vm347, %v310
        %360 = vst.msk [vmem:[%s188 + $0x60] sm:$0xff] %vm347, %v311
        %361 = vst.msk [vmem:[%s188 + $0x68] sm:$0xff] %vm347, %v312
        %362 = vst.msk [vmem:[%s188 + $0x70] sm:$0xff] %vm347, %v313
        %363 = vst.msk [vmem:[%s188 + $0x78] sm:$0xff] %vm347, %v314
        %364 = vst.msk [vmem:[%s188 + $0x80] sm:$0xff] %vm347, %v331
        %365 = vst.msk [vmem:[%s188 + $0x88] sm:$0xff] %vm347, %v332
        %366 = vst.msk [vmem:[%s188 + $0x90] sm:$0xff] %vm347, %v333
        %367 = vst.msk [vmem:[%s188 + $0x98] sm:$0xff] %vm347, %v334
        %368 = vst.msk [vmem:[%s188 + $0xa0] sm:$0xff] %vm347, %v335
        %369 = vst.msk [vmem:[%s188 + $0xa8] sm:$0xff] %vm347, %v336
        %370 = vst.msk [vmem:[%s188 + $0xb0] sm:$0xff] %vm347, %v337
        %371 = vst.msk [vmem:[%s188 + $0xb8] sm:$0xff] %vm347, %v338
        %372 = vst.msk [vmem:[%s188 + $0xc0] sm:$0xff] %vm347, %v339
        %373 = vst.msk [vmem:[%s188 + $0xc8] sm:$0xff] %vm347, %v340
        %374 = vst.msk [vmem:[%s188 + $0xd0] sm:$0xff] %vm347, %v341
        %375 = vst.msk [vmem:[%s188 + $0xd8] sm:$0xff] %vm347, %v342
        %376 = vst.msk [vmem:[%s188 + $0xe0] sm:$0xff] %vm347, %v343
        %377 = vst.msk [vmem:[%s188 + $0xe8] sm:$0xff] %vm347, %v344
        %378 = vst.msk [vmem:[%s188 + $0xf0] sm:$0xff] %vm347, %v345
        %379 = vst.msk [vmem:[%s188 + $0xf8] sm:$0xff] %vm347, %v346
        %380 = vxpose.xlu0.b32.start [1/16] %v281, 128
        %381 = vxpose.xlu0.b32.cont [2/16] 0.0, 128
        %382 = vxpose.xlu0.b32.cont [3/16] 0.0, 128
        %383 = vxpose.xlu0.b32.cont [4/16] 0.0, 128
        %384 = vxpose.xlu0.b32.cont [5/16] 0.0, 128
        %385 = vxpose.xlu0.b32.cont [6/16] 0.0, 128
        %386 = vxpose.xlu0.b32.cont [7/16] 0.0, 128
        %387 = vxpose.xlu0.b32.cont [8/16] 0.0, 128
        %388 = vxpose.xlu0.b32.cont [9/16] 0.0, 128
        %389 = vxpose.xlu0.b32.cont [10/16] 0.0, 128
        %390 = vxpose.xlu0.b32.cont [11/16] 0.0, 128
        %391 = vxpose.xlu0.b32.cont [12/16] 0.0, 128
        %392 = vxpose.xlu0.b32.cont [13/16] 0.0, 128
        %393 = vxpose.xlu0.b32.cont [14/16] 0.0, 128
        %394 = vxpose.xlu0.b32.cont [15/16] 0.0, 128
        %395 = vxpose.xlu0.b32.end [16/16] 0.0, 128
        %v396 = vpop.trf.xlu0
        %v397 = vpop.trf.xlu0
        %v398 = vpop.trf.xlu0
        %v399 = vpop.trf.xlu0
        %v400 = vpop.trf.xlu0
        %v401 = vpop.trf.xlu0
        %v402 = vpop.trf.xlu0
        %v403 = vpop.trf.xlu0
        %v404 = vpop.trf.xlu0
        %v405 = vpop.trf.xlu0
        %v406 = vpop.trf.xlu0
        %v407 = vpop.trf.xlu0
        %v408 = vpop.trf.xlu0
        %v409 = vpop.trf.xlu0
        %v410 = vpop.trf.xlu0
        %v411 = vpop.trf.xlu0
        %412 = vxpose.xlu0.b32.start [1/16] %v282, 128
        %413 = vxpose.xlu0.b32.cont [2/16] 0.0, 128
        %414 = vxpose.xlu0.b32.cont [3/16] 0.0, 128
        %415 = vxpose.xlu0.b32.cont [4/16] 0.0, 128
        %416 = vxpose.xlu0.b32.cont [5/16] 0.0, 128
        %417 = vxpose.xlu0.b32.cont [6/16] 0.0, 128
        %418 = vxpose.xlu0.b32.cont [7/16] 0.0, 128
        %419 = vxpose.xlu0.b32.cont [8/16] 0.0, 128
        %420 = vxpose.xlu0.b32.cont [9/16] 0.0, 128
        %421 = vxpose.xlu0.b32.cont [10/16] 0.0, 128
        %422 = vxpose.xlu0.b32.cont [11/16] 0.0, 128
        %423 = vxpose.xlu0.b32.cont [12/16] 0.0, 128
        %424 = vxpose.xlu0.b32.cont [13/16] 0.0, 128
        %425 = vxpose.xlu0.b32.cont [14/16] 0.0, 128
        %426 = vxpose.xlu0.b32.cont [15/16] 0.0, 128
        %427 = vxpose.xlu0.b32.end [16/16] 0.0, 128
        %v428 = vpop.trf.xlu0
        %v429 = vpop.trf.xlu0
        %v430 = vpop.trf.xlu0
        %v431 = vpop.trf.xlu0
        %v432 = vpop.trf.xlu0
        %v433 = vpop.trf.xlu0
        %v434 = vpop.trf.xlu0
        %v435 = vpop.trf.xlu0
        %v436 = vpop.trf.xlu0
        %v437 = vpop.trf.xlu0
        %v438 = vpop.trf.xlu0
        %v439 = vpop.trf.xlu0
        %v440 = vpop.trf.xlu0
        %v441 = vpop.trf.xlu0
        %v442 = vpop.trf.xlu0
        %v443 = vpop.trf.xlu0
        %s444 = scalar_lea.vmem %s188, 256 [#allocation6]
        %445 = vst.msk [vmem:[%s444] sm:$0xff] %vm347, %v396
        %446 = vst.msk [vmem:[%s444 + $0x8] sm:$0xff] %vm347, %v397
        %447 = vst.msk [vmem:[%s444 + $0x10] sm:$0xff] %vm347, %v398
        %448 = vst.msk [vmem:[%s444 + $0x18] sm:$0xff] %vm347, %v399
        %449 = vst.msk [vmem:[%s444 + $0x20] sm:$0xff] %vm347, %v400
        %450 = vst.msk [vmem:[%s444 + $0x28] sm:$0xff] %vm347, %v401
        %451 = vst.msk [vmem:[%s444 + $0x30] sm:$0xff] %vm347, %v402
        %452 = vst.msk [vmem:[%s444 + $0x38] sm:$0xff] %vm347, %v403
        %453 = vst.msk [vmem:[%s444 + $0x40] sm:$0xff] %vm347, %v404
        %454 = vst.msk [vmem:[%s444 + $0x48] sm:$0xff] %vm347, %v405
        %455 = vst.msk [vmem:[%s444 + $0x50] sm:$0xff] %vm347, %v406
        %456 = vst.msk [vmem:[%s444 + $0x58] sm:$0xff] %vm347, %v407
        %457 = vst.msk [vmem:[%s444 + $0x60] sm:$0xff] %vm347, %v408
        %458 = vst.msk [vmem:[%s444 + $0x68] sm:$0xff] %vm347, %v409
        %459 = vst.msk [vmem:[%s444 + $0x70] sm:$0xff] %vm347, %v410
        %460 = vst.msk [vmem:[%s444 + $0x78] sm:$0xff] %vm347, %v411
        %461 = vst.msk [vmem:[%s444 + $0x80] sm:$0xff] %vm347, %v428
        %462 = vst.msk [vmem:[%s444 + $0x88] sm:$0xff] %vm347, %v429
        %463 = vst.msk [vmem:[%s444 + $0x90] sm:$0xff] %vm347, %v430
        %464 = vst.msk [vmem:[%s444 + $0x98] sm:$0xff] %vm347, %v431
        %465 = vst.msk [vmem:[%s444 + $0xa0] sm:$0xff] %vm347, %v432
        %466 = vst.msk [vmem:[%s444 + $0xa8] sm:$0xff] %vm347, %v433
        %467 = vst.msk [vmem:[%s444 + $0xb0] sm:$0xff] %vm347, %v434
        %468 = vst.msk [vmem:[%s444 + $0xb8] sm:$0xff] %vm347, %v435
        %469 = vst.msk [vmem:[%s444 + $0xc0] sm:$0xff] %vm347, %v436
        %470 = vst.msk [vmem:[%s444 + $0xc8] sm:$0xff] %vm347, %v437
        %471 = vst.msk [vmem:[%s444 + $0xd0] sm:$0xff] %vm347, %v438
        %472 = vst.msk [vmem:[%s444 + $0xd8] sm:$0xff] %vm347, %v439
        %473 = vst.msk [vmem:[%s444 + $0xe0] sm:$0xff] %vm347, %v440
        %474 = vst.msk [vmem:[%s444 + $0xe8] sm:$0xff] %vm347, %v441
        %475 = vst.msk [vmem:[%s444 + $0xf0] sm:$0xff] %vm347, %v442
        %476 = vst.msk [vmem:[%s444 + $0xf8] sm:$0xff] %vm347, %v443
        %s477 = sand.u32 %s88, 1
        %s478 = sand.u32 %s88, 1
        %s479 = smul.addr %s478, 512
        %s480 = scalar_lea.vmem [#allocation6], %s479
        // Predicated region
        $region37: #{tpu_custom_call.1} parent=27 // pred_check
          %p481 = pneg %p98
        $region38: #{tpu_custom_call.1} parent=27 // pred_check_branch
          %483 = sbr.rel (%p481) target = $region40
        $region39: #{tpu_custom_call.1} parent=27 // pred_region
          %s484 = smul.u32 2, %s21
          %s485 = smul.addr %s22, 32
          %s486 = smul.addr %s484, 96
          %s487 = sadd.s32 %s485, %s486
          %s488 = smul.addr %s487, 8
          %s489 = scalar_lea.vmem %s2, %s488
          // Predicated region
          $region41: #{tpu_custom_call.1} parent=39 // pred_check
            _
          $region42: #{tpu_custom_call.1} parent=39 // pred_check_branch
            %491 = sbr.rel (0) target = $region44
          $region43: #{tpu_custom_call.1} parent=39 // pred_region
            // Predicated region
            $region45: #{tpu_custom_call.1} parent=43 // pred_check
              _
            $region46: #{tpu_custom_call.1} parent=43 // pred_check_branch
              %493 = sbr.rel (0) target = $region48
            $region47: #{tpu_custom_call.1} parent=43 // pred_region
              // Predicated region
              $region60: #{tpu_custom_call.1} parent=47 // pred_check
                _
              $region61: #{tpu_custom_call.1} parent=47 // pred_check_branch
                %635 = sbr.rel (0) target = $region63
              $region62: #{tpu_custom_call.1} parent=47 // pred_region
                loop: start=0, step=1, limit=1
                $region64: #{tpu_custom_call.1} parent=62 // loop_pre_header
                  _
                $region65: #{tpu_custom_call.1} parent=62 // loop_header
                  %s637 = sphi 0, %s641
                  %p638 = scmp.ge.s32.totalorder %s637, 1
                  %s642 = sphi %s480, %s480
                  %s643 = sphi %s489, %s489
                $region66: #{tpu_custom_call.1} parent=62 // loop_header_branch
                  %640 = sbr.rel (%p638) target = $region70
                $region67: #{tpu_custom_call.1} parent=62 // loop_body
                  %v644 = vld [vmem:[%s642] sm:$0xff]
                  %645 = vst [vmem:[%s643] sm:$0xff] %v644
                  %v646 = vld [vmem:[%s642 + $0x8] sm:$0xff]
                  %647 = vst [vmem:[%s643 + $0x8] sm:$0xff] %v646
                  %v648 = vld [vmem:[%s642 + $0x10] sm:$0xff]
                  %649 = vst [vmem:[%s643 + $0x10] sm:$0xff] %v648
                  %v650 = vld [vmem:[%s642 + $0x18] sm:$0xff]
                  %651 = vst [vmem:[%s643 + $0x18] sm:$0xff] %v650
                  %v652 = vld [vmem:[%s642 + $0x20] sm:$0xff]
                  %653 = vst [vmem:[%s643 + $0x20] sm:$0xff] %v652
                  %v654 = vld [vmem:[%s642 + $0x28] sm:$0xff]
                  %655 = vst [vmem:[%s643 + $0x28] sm:$0xff] %v654
                  %v656 = vld [vmem:[%s642 + $0x30] sm:$0xff]
                  %657 = vst [vmem:[%s643 + $0x30] sm:$0xff] %v656
                  %v658 = vld [vmem:[%s642 + $0x38] sm:$0xff]
                  %659 = vst [vmem:[%s643 + $0x38] sm:$0xff] %v658
                  %v660 = vld [vmem:[%s642 + $0x40] sm:$0xff]
                  %661 = vst [vmem:[%s643 + $0x40] sm:$0xff] %v660
                  %v662 = vld [vmem:[%s642 + $0x48] sm:$0xff]
                  %663 = vst [vmem:[%s643 + $0x48] sm:$0xff] %v662
                  %v664 = vld [vmem:[%s642 + $0x50] sm:$0xff]
                  %665 = vst [vmem:[%s643 + $0x50] sm:$0xff] %v664
                  %v666 = vld [vmem:[%s642 + $0x58] sm:$0xff]
                  %667 = vst [vmem:[%s643 + $0x58] sm:$0xff] %v666
                  %v668 = vld [vmem:[%s642 + $0x60] sm:$0xff]
                  %669 = vst [vmem:[%s643 + $0x60] sm:$0xff] %v668
                  %v670 = vld [vmem:[%s642 + $0x68] sm:$0xff]
                  %671 = vst [vmem:[%s643 + $0x68] sm:$0xff] %v670
                  %v672 = vld [vmem:[%s642 + $0x70] sm:$0xff]
                  %673 = vst [vmem:[%s643 + $0x70] sm:$0xff] %v672
                  %v674 = vld [vmem:[%s642 + $0x78] sm:$0xff]
                  %675 = vst [vmem:[%s643 + $0x78] sm:$0xff] %v674
                  %v676 = vld [vmem:[%s642 + $0x80] sm:$0xff]
                  %677 = vst [vmem:[%s643 + $0x80] sm:$0xff] %v676
                  %v678 = vld [vmem:[%s642 + $0x88] sm:$0xff]
                  %679 = vst [vmem:[%s643 + $0x88] sm:$0xff] %v678
                  %v680 = vld [vmem:[%s642 + $0x90] sm:$0xff]
                  %681 = vst [vmem:[%s643 + $0x90] sm:$0xff] %v680
                  %v682 = vld [vmem:[%s642 + $0x98] sm:$0xff]
                  %683 = vst [vmem:[%s643 + $0x98] sm:$0xff] %v682
                  %v684 = vld [vmem:[%s642 + $0xa0] sm:$0xff]
                  %685 = vst [vmem:[%s643 + $0xa0] sm:$0xff] %v684
                  %v686 = vld [vmem:[%s642 + $0xa8] sm:$0xff]
                  %687 = vst [vmem:[%s643 + $0xa8] sm:$0xff] %v686
                  %v688 = vld [vmem:[%s642 + $0xb0] sm:$0xff]
                  %689 = vst [vmem:[%s643 + $0xb0] sm:$0xff] %v688
                  %v690 = vld [vmem:[%s642 + $0xb8] sm:$0xff]
                  %691 = vst [vmem:[%s643 + $0xb8] sm:$0xff] %v690
                  %v692 = vld [vmem:[%s642 + $0xc0] sm:$0xff]
                  %693 = vst [vmem:[%s643 + $0xc0] sm:$0xff] %v692
                  %v694 = vld [vmem:[%s642 + $0xc8] sm:$0xff]
                  %695 = vst [vmem:[%s643 + $0xc8] sm:$0xff] %v694
                  %v696 = vld [vmem:[%s642 + $0xd0] sm:$0xff]
                  %697 = vst [vmem:[%s643 + $0xd0] sm:$0xff] %v696
                  %v698 = vld [vmem:[%s642 + $0xd8] sm:$0xff]
                  %699 = vst [vmem:[%s643 + $0xd8] sm:$0xff] %v698
                  %v700 = vld [vmem:[%s642 + $0xe0] sm:$0xff]
                  %701 = vst [vmem:[%s643 + $0xe0] sm:$0xff] %v700
                  %v702 = vld [vmem:[%s642 + $0xe8] sm:$0xff]
                  %703 = vst [vmem:[%s643 + $0xe8] sm:$0xff] %v702
                  %v704 = vld [vmem:[%s642 + $0xf0] sm:$0xff]
                  %705 = vst [vmem:[%s643 + $0xf0] sm:$0xff] %v704
                  %v706 = vld [vmem:[%s642 + $0xf8] sm:$0xff]
                  %707 = vst [vmem:[%s643 + $0xf8] sm:$0xff] %v706
                  %v708 = vld [vmem:[%s642 + $0x100] sm:$0xff]
                  %709 = vst [vmem:[%s643 + $0x300] sm:$0xff] %v708
                  %v710 = vld [vmem:[%s642 + $0x108] sm:$0xff]
                  %711 = vst [vmem:[%s643 + $0x308] sm:$0xff] %v710
                  %v712 = vld [vmem:[%s642 + $0x110] sm:$0xff]
                  %713 = vst [vmem:[%s643 + $0x310] sm:$0xff] %v712
                  %v714 = vld [vmem:[%s642 + $0x118] sm:$0xff]
                  %715 = vst [vmem:[%s643 + $0x318] sm:$0xff] %v714
                  %v716 = vld [vmem:[%s642 + $0x120] sm:$0xff]
                  %717 = vst [vmem:[%s643 + $0x320] sm:$0xff] %v716
                  %v718 = vld [vmem:[%s642 + $0x128] sm:$0xff]
                  %719 = vst [vmem:[%s643 + $0x328] sm:$0xff] %v718
                  %v720 = vld [vmem:[%s642 + $0x130] sm:$0xff]
                  %721 = vst [vmem:[%s643 + $0x330] sm:$0xff] %v720
                  %v722 = vld [vmem:[%s642 + $0x138] sm:$0xff]
                  %723 = vst [vmem:[%s643 + $0x338] sm:$0xff] %v722
                  %v724 = vld [vmem:[%s642 + $0x140] sm:$0xff]
                  %725 = vst [vmem:[%s643 + $0x340] sm:$0xff] %v724
                  %v726 = vld [vmem:[%s642 + $0x148] sm:$0xff]
                  %727 = vst [vmem:[%s643 + $0x348] sm:$0xff] %v726
                  %v728 = vld [vmem:[%s642 + $0x150] sm:$0xff]
                  %729 = vst [vmem:[%s643 + $0x350] sm:$0xff] %v728
                  %v730 = vld [vmem:[%s642 + $0x158] sm:$0xff]
                  %731 = vst [vmem:[%s643 + $0x358] sm:$0xff] %v730
                  %v732 = vld [vmem:[%s642 + $0x160] sm:$0xff]
                  %733 = vst [vmem:[%s643 + $0x360] sm:$0xff] %v732
                  %v734 = vld [vmem:[%s642 + $0x168] sm:$0xff]
                  %735 = vst [vmem:[%s643 + $0x368] sm:$0xff] %v734
                  %v736 = vld [vmem:[%s642 + $0x170] sm:$0xff]
                  %737 = vst [vmem:[%s643 + $0x370] sm:$0xff] %v736
                  %v738 = vld [vmem:[%s642 + $0x178] sm:$0xff]
                  %739 = vst [vmem:[%s643 + $0x378] sm:$0xff] %v738
                  %v740 = vld [vmem:[%s642 + $0x180] sm:$0xff]
                  %741 = vst [vmem:[%s643 + $0x380] sm:$0xff] %v740
                  %v742 = vld [vmem:[%s642 + $0x188] sm:$0xff]
                  %743 = vst [vmem:[%s643 + $0x388] sm:$0xff] %v742
                  %v744 = vld [vmem:[%s642 + $0x190] sm:$0xff]
                  %745 = vst [vmem:[%s643 + $0x390] sm:$0xff] %v744
                  %v746 = vld [vmem:[%s642 + $0x198] sm:$0xff]
                  %747 = vst [vmem:[%s643 + $0x398] sm:$0xff] %v746
                  %v748 = vld [vmem:[%s642 + $0x1a0] sm:$0xff]
                  %749 = vst [vmem:[%s643 + $0x3a0] sm:$0xff] %v748
                  %v750 = vld [vmem:[%s642 + $0x1a8] sm:$0xff]
                  %751 = vst [vmem:[%s643 + $0x3a8] sm:$0xff] %v750
                  %v752 = vld [vmem:[%s642 + $0x1b0] sm:$0xff]
                  %753 = vst [vmem:[%s643 + $0x3b0] sm:$0xff] %v752
                  %v754 = vld [vmem:[%s642 + $0x1b8] sm:$0xff]
                  %755 = vst [vmem:[%s643 + $0x3b8] sm:$0xff] %v754
                  %v756 = vld [vmem:[%s642 + $0x1c0] sm:$0xff]
                  %757 = vst [vmem:[%s643 + $0x3c0] sm:$0xff] %v756
                  %v758 = vld [vmem:[%s642 + $0x1c8] sm:$0xff]
                  %759 = vst [vmem:[%s643 + $0x3c8] sm:$0xff] %v758
                  %v760 = vld [vmem:[%s642 + $0x1d0] sm:$0xff]
                  %761 = vst [vmem:[%s643 + $0x3d0] sm:$0xff] %v760
                  %v762 = vld [vmem:[%s642 + $0x1d8] sm:$0xff]
                  %763 = vst [vmem:[%s643 + $0x3d8] sm:$0xff] %v762
                  %v764 = vld [vmem:[%s642 + $0x1e0] sm:$0xff]
                  %765 = vst [vmem:[%s643 + $0x3e0] sm:$0xff] %v764
                  %v766 = vld [vmem:[%s642 + $0x1e8] sm:$0xff]
                  %767 = vst [vmem:[%s643 + $0x3e8] sm:$0xff] %v766
                  %v768 = vld [vmem:[%s642 + $0x1f0] sm:$0xff]
                  %769 = vst [vmem:[%s643 + $0x3f0] sm:$0xff] %v768
                  %v770 = vld [vmem:[%s642 + $0x1f8] sm:$0xff]
                  %771 = vst [vmem:[%s643 + $0x3f8] sm:$0xff] %v770
                $region68: #{tpu_custom_call.1} parent=62 // loop_footer
                  %s641 = sadd.s32 1, %s637
                $region69: #{tpu_custom_call.1} parent=62 // loop_footer_branch
                  %636 = sbr.rel target = $region65
                $region70: #{tpu_custom_call.1} parent=62 // loop_exit
                  _
              $region63: #{tpu_custom_call.1} parent=47 // pred_fallthru
                _
              // Predicated region
              $region71: #{tpu_custom_call.1} parent=47 // pred_check
                _
              $region72: #{tpu_custom_call.1} parent=47 // pred_check_branch
                %773 = sbr.rel target = $region74
              $region73: #{tpu_custom_call.1} parent=47 // pred_region
                _
              $region74: #{tpu_custom_call.1} parent=47 // pred_fallthru
                _
            $region48: #{tpu_custom_call.1} parent=43 // pred_fallthru
              _
            // Predicated region
            $region49: #{tpu_custom_call.1} parent=43 // pred_check
              _
            $region50: #{tpu_custom_call.1} parent=43 // pred_check_branch
              %495 = sbr.rel target = $region52
            $region51: #{tpu_custom_call.1} parent=43 // pred_region
              %s497 = ssub.s32 256, 1
              loop: start=0, step=1, limit=1
              $region53: #{tpu_custom_call.1} parent=51 // loop_pre_header
                _
              $region54: #{tpu_custom_call.1} parent=51 // loop_header
                %s499 = sphi 0, %s503
                %p500 = scmp.ge.s32.totalorder %s499, 1
                %s504 = sphi %s480, %s480
                %s505 = sphi %s489, %s489
              $region55: #{tpu_custom_call.1} parent=51 // loop_header_branch
                %502 = sbr.rel (%p500) target = $region59
              $region56: #{tpu_custom_call.1} parent=51 // loop_body
                %v506 = vld [vmem:[%s504] sm:%s497]
                %507 = vst [vmem:[%s505] sm:%s497] %v506
                %v508 = vld [vmem:[%s504 + $0x8] sm:%s497]
                %509 = vst [vmem:[%s505 + $0x8] sm:%s497] %v508
                %v510 = vld [vmem:[%s504 + $0x10] sm:%s497]
                %511 = vst [vmem:[%s505 + $0x10] sm:%s497] %v510
                %v512 = vld [vmem:[%s504 + $0x18] sm:%s497]
                %513 = vst [vmem:[%s505 + $0x18] sm:%s497] %v512
                %v514 = vld [vmem:[%s504 + $0x20] sm:%s497]
                %515 = vst [vmem:[%s505 + $0x20] sm:%s497] %v514
                %v516 = vld [vmem:[%s504 + $0x28] sm:%s497]
                %517 = vst [vmem:[%s505 + $0x28] sm:%s497] %v516
                %v518 = vld [vmem:[%s504 + $0x30] sm:%s497]
                %519 = vst [vmem:[%s505 + $0x30] sm:%s497] %v518
                %v520 = vld [vmem:[%s504 + $0x38] sm:%s497]
                %521 = vst [vmem:[%s505 + $0x38] sm:%s497] %v520
                %v522 = vld [vmem:[%s504 + $0x40] sm:%s497]
                %523 = vst [vmem:[%s505 + $0x40] sm:%s497] %v522
                %v524 = vld [vmem:[%s504 + $0x48] sm:%s497]
                %525 = vst [vmem:[%s505 + $0x48] sm:%s497] %v524
                %v526 = vld [vmem:[%s504 + $0x50] sm:%s497]
                %527 = vst [vmem:[%s505 + $0x50] sm:%s497] %v526
                %v528 = vld [vmem:[%s504 + $0x58] sm:%s497]
                %529 = vst [vmem:[%s505 + $0x58] sm:%s497] %v528
                %v530 = vld [vmem:[%s504 + $0x60] sm:%s497]
                %531 = vst [vmem:[%s505 + $0x60] sm:%s497] %v530
                %v532 = vld [vmem:[%s504 + $0x68] sm:%s497]
                %533 = vst [vmem:[%s505 + $0x68] sm:%s497] %v532
                %v534 = vld [vmem:[%s504 + $0x70] sm:%s497]
                %535 = vst [vmem:[%s505 + $0x70] sm:%s497] %v534
                %v536 = vld [vmem:[%s504 + $0x78] sm:%s497]
                %537 = vst [vmem:[%s505 + $0x78] sm:%s497] %v536
                %v538 = vld [vmem:[%s504 + $0x80] sm:%s497]
                %539 = vst [vmem:[%s505 + $0x80] sm:%s497] %v538
                %v540 = vld [vmem:[%s504 + $0x88] sm:%s497]
                %541 = vst [vmem:[%s505 + $0x88] sm:%s497] %v540
                %v542 = vld [vmem:[%s504 + $0x90] sm:%s497]
                %543 = vst [vmem:[%s505 + $0x90] sm:%s497] %v542
                %v544 = vld [vmem:[%s504 + $0x98] sm:%s497]
                %545 = vst [vmem:[%s505 + $0x98] sm:%s497] %v544
                %v546 = vld [vmem:[%s504 + $0xa0] sm:%s497]
                %547 = vst [vmem:[%s505 + $0xa0] sm:%s497] %v546
                %v548 = vld [vmem:[%s504 + $0xa8] sm:%s497]
                %549 = vst [vmem:[%s505 + $0xa8] sm:%s497] %v548
                %v550 = vld [vmem:[%s504 + $0xb0] sm:%s497]
                %551 = vst [vmem:[%s505 + $0xb0] sm:%s497] %v550
                %v552 = vld [vmem:[%s504 + $0xb8] sm:%s497]
                %553 = vst [vmem:[%s505 + $0xb8] sm:%s497] %v552
                %v554 = vld [vmem:[%s504 + $0xc0] sm:%s497]
                %555 = vst [vmem:[%s505 + $0xc0] sm:%s497] %v554
                %v556 = vld [vmem:[%s504 + $0xc8] sm:%s497]
                %557 = vst [vmem:[%s505 + $0xc8] sm:%s497] %v556
                %v558 = vld [vmem:[%s504 + $0xd0] sm:%s497]
                %559 = vst [vmem:[%s505 + $0xd0] sm:%s497] %v558
                %v560 = vld [vmem:[%s504 + $0xd8] sm:%s497]
                %561 = vst [vmem:[%s505 + $0xd8] sm:%s497] %v560
                %v562 = vld [vmem:[%s504 + $0xe0] sm:%s497]
                %563 = vst [vmem:[%s505 + $0xe0] sm:%s497] %v562
                %v564 = vld [vmem:[%s504 + $0xe8] sm:%s497]
                %565 = vst [vmem:[%s505 + $0xe8] sm:%s497] %v564
                %v566 = vld [vmem:[%s504 + $0xf0] sm:%s497]
                %567 = vst [vmem:[%s505 + $0xf0] sm:%s497] %v566
                %v568 = vld [vmem:[%s504 + $0xf8] sm:%s497]
                %569 = vst [vmem:[%s505 + $0xf8] sm:%s497] %v568
                %v570 = vld [vmem:[%s504 + $0x100] sm:%s497]
                %571 = vst [vmem:[%s505 + $0x300] sm:%s497] %v570
                %v572 = vld [vmem:[%s504 + $0x108] sm:%s497]
                %573 = vst [vmem:[%s505 + $0x308] sm:%s497] %v572
                %v574 = vld [vmem:[%s504 + $0x110] sm:%s497]
                %575 = vst [vmem:[%s505 + $0x310] sm:%s497] %v574
                %v576 = vld [vmem:[%s504 + $0x118] sm:%s497]
                %577 = vst [vmem:[%s505 + $0x318] sm:%s497] %v576
                %v578 = vld [vmem:[%s504 + $0x120] sm:%s497]
                %579 = vst [vmem:[%s505 + $0x320] sm:%s497] %v578
                %v580 = vld [vmem:[%s504 + $0x128] sm:%s497]
                %581 = vst [vmem:[%s505 + $0x328] sm:%s497] %v580
                %v582 = vld [vmem:[%s504 + $0x130] sm:%s497]
                %583 = vst [vmem:[%s505 + $0x330] sm:%s497] %v582
                %v584 = vld [vmem:[%s504 + $0x138] sm:%s497]
                %585 = vst [vmem:[%s505 + $0x338] sm:%s497] %v584
                %v586 = vld [vmem:[%s504 + $0x140] sm:%s497]
                %587 = vst [vmem:[%s505 + $0x340] sm:%s497] %v586
                %v588 = vld [vmem:[%s504 + $0x148] sm:%s497]
                %589 = vst [vmem:[%s505 + $0x348] sm:%s497] %v588
                %v590 = vld [vmem:[%s504 + $0x150] sm:%s497]
                %591 = vst [vmem:[%s505 + $0x350] sm:%s497] %v590
                %v592 = vld [vmem:[%s504 + $0x158] sm:%s497]
                %593 = vst [vmem:[%s505 + $0x358] sm:%s497] %v592
                %v594 = vld [vmem:[%s504 + $0x160] sm:%s497]
                %595 = vst [vmem:[%s505 + $0x360] sm:%s497] %v594
                %v596 = vld [vmem:[%s504 + $0x168] sm:%s497]
                %597 = vst [vmem:[%s505 + $0x368] sm:%s497] %v596
                %v598 = vld [vmem:[%s504 + $0x170] sm:%s497]
                %599 = vst [vmem:[%s505 + $0x370] sm:%s497] %v598
                %v600 = vld [vmem:[%s504 + $0x178] sm:%s497]
                %601 = vst [vmem:[%s505 + $0x378] sm:%s497] %v600
                %v602 = vld [vmem:[%s504 + $0x180] sm:%s497]
                %603 = vst [vmem:[%s505 + $0x380] sm:%s497] %v602
                %v604 = vld [vmem:[%s504 + $0x188] sm:%s497]
                %605 = vst [vmem:[%s505 + $0x388] sm:%s497] %v604
                %v606 = vld [vmem:[%s504 + $0x190] sm:%s497]
                %607 = vst [vmem:[%s505 + $0x390] sm:%s497] %v606
                %v608 = vld [vmem:[%s504 + $0x198] sm:%s497]
                %609 = vst [vmem:[%s505 + $0x398] sm:%s497] %v608
                %v610 = vld [vmem:[%s504 + $0x1a0] sm:%s497]
                %611 = vst [vmem:[%s505 + $0x3a0] sm:%s497] %v610
                %v612 = vld [vmem:[%s504 + $0x1a8] sm:%s497]
                %613 = vst [vmem:[%s505 + $0x3a8] sm:%s497] %v612
                %v614 = vld [vmem:[%s504 + $0x1b0] sm:%s497]
                %615 = vst [vmem:[%s505 + $0x3b0] sm:%s497] %v614
                %v616 = vld [vmem:[%s504 + $0x1b8] sm:%s497]
                %617 = vst [vmem:[%s505 + $0x3b8] sm:%s497] %v616
                %v618 = vld [vmem:[%s504 + $0x1c0] sm:%s497]
                %619 = vst [vmem:[%s505 + $0x3c0] sm:%s497] %v618
                %v620 = vld [vmem:[%s504 + $0x1c8] sm:%s497]
                %621 = vst [vmem:[%s505 + $0x3c8] sm:%s497] %v620
                %v622 = vld [vmem:[%s504 + $0x1d0] sm:%s497]
                %623 = vst [vmem:[%s505 + $0x3d0] sm:%s497] %v622
                %v624 = vld [vmem:[%s504 + $0x1d8] sm:%s497]
                %625 = vst [vmem:[%s505 + $0x3d8] sm:%s497] %v624
                %v626 = vld [vmem:[%s504 + $0x1e0] sm:%s497]
                %627 = vst [vmem:[%s505 + $0x3e0] sm:%s497] %v626
                %v628 = vld [vmem:[%s504 + $0x1e8] sm:%s497]
                %629 = vst [vmem:[%s505 + $0x3e8] sm:%s497] %v628
                %v630 = vld [vmem:[%s504 + $0x1f0] sm:%s497]
                %631 = vst [vmem:[%s505 + $0x3f0] sm:%s497] %v630
                %v632 = vld [vmem:[%s504 + $0x1f8] sm:%s497]
                %633 = vst [vmem:[%s505 + $0x3f8] sm:%s497] %v632
              $region57: #{tpu_custom_call.1} parent=51 // loop_footer
                %s503 = sadd.s32 1, %s499
              $region58: #{tpu_custom_call.1} parent=51 // loop_footer_branch
                %498 = sbr.rel target = $region54
              $region59: #{tpu_custom_call.1} parent=51 // loop_exit
                _
            $region52: #{tpu_custom_call.1} parent=43 // pred_fallthru
              _
          $region44: #{tpu_custom_call.1} parent=39 // pred_fallthru
            _
          %774 = vnop
        $region40: #{tpu_custom_call.1} parent=27 // pred_fallthru
          _
      $region28: #{tpu_custom_call.1} parent=5 // pred_fallthru
        _
      %p775 = scmp.le.s32.totalorder 2, %s12
      // Predicated region
      $region75: #{tpu_custom_call.1} parent=5 // pred_check
        %p776 = pneg %p775
      $region76: #{tpu_custom_call.1} parent=5 // pred_check_branch
        %778 = sbr.rel (%p776) target = $region78
      $region77: #{tpu_custom_call.1} parent=5 // pred_region
        %s779 = ssub.s32 %s12, 2
        // Predicated region
        $region79: #{tpu_custom_call.1} parent=77 // pred_check
          %p780 = pneg %p104
        $region80: #{tpu_custom_call.1} parent=77 // pred_check_branch
          %782 = sbr.rel (%p780) target = $region82
        $region81: #{tpu_custom_call.1} parent=77 // pred_region
          %s783 = sand.u32 %s89, 1
          %s784 = sand.u32 %s89, 1
          %s785 = smul.addr %s784, 512
          %s786 = scalar_lea.vmem [#allocation6], %s785
        $region82: #{tpu_custom_call.1} parent=77 // pred_fallthru
          _
      $region78: #{tpu_custom_call.1} parent=5 // pred_fallthru
        _
    $region6: #{tpu_custom_call.1} parent=1 // loop_footer
      %s16 = sadd.s32 1, %s12
    $region7: #{tpu_custom_call.1} parent=1 // loop_footer_branch
      %11 = sbr.rel target = $region3
    $region8: #{tpu_custom_call.1} parent=1 // loop_exit
      _
    %787 = vsyncpa [#allocation3], 1
    %s788 = scalar_lea.sflag [#allocation3], 1
    %789 = vsyncpa %s788, 1
    %790 = vsyncpa [#allocation4], 1
    %s791 = scalar_lea.sflag [#allocation4], 1
    %792 = vsyncpa %s791, 1

</llo_original>
